<compile_context>
chip_gen: v6e
topology: v6e:2x2x1
jax: 0.10.0
libtpu: 0.0.40
codegen_flags: <defaults>
</compile_context>

<pallas_src>
import functools

import jax
import jax.numpy as jnp
from jax.experimental import pallas as pl
from jax.experimental.pallas import tpu as pltpu


def _round_up(n, m):
    return ((n + m - 1) // m) * m


# ---------------------------------------------------------------------------
# Pallas kernel: whole MLP fused (split first-layer weight, chained MXU dots)
# ---------------------------------------------------------------------------
def _ccgen_fused_kernel(noise_ref, x_ref, *refs, relu_flags):
    """refs = (w1_noise, w1_x, b1, w2, b2, ..., wL, bL, out_ref).

    All intermediates live in vregs/VMEM; only the final result block is
    stored to HBM.
    """
    out_ref = refs[-1]
    p = refs[:-1]
    num_layers = len(relu_flags)

    # Layer 1: noise @ W1[:dn] + x @ W1[dn:] + b1  ==  concat([noise, x]) @ W1 + b1
    w1n = p[0][...]
    w1x = p[1][...]
    lhs_n = noise_ref[...]
    lhs_x = x_ref[...]
    if w1n.dtype != lhs_n.dtype:          # optional bf16-weight fast path
        lhs_n = lhs_n.astype(w1n.dtype)
        lhs_x = lhs_x.astype(w1x.dtype)
    acc = jnp.dot(lhs_n, w1n, preferred_element_type=jnp.float32)
    acc = acc + jnp.dot(lhs_x, w1x, preferred_element_type=jnp.float32)
    acc = acc + p[2][...]                 # bias kept f32; epilogue in f32
    if relu_flags[0]:
        acc = jnp.maximum(acc, 0.0)

    idx = 3
    for l in range(1, num_layers):
        w = p[idx][...]
        b = p[idx + 1][...]
        idx += 2
        lhs = acc.astype(w.dtype) if w.dtype != acc.dtype else acc
        acc = jnp.dot(lhs, w, preferred_element_type=jnp.float32) + b
        if relu_flags[l]:
            acc = jnp.maximum(acc, 0.0)

    out_ref[...] = acc.astype(out_ref.dtype)


# ---------------------------------------------------------------------------
# Parameter construction (deterministic; mimics nn.Linear default init)
# ---------------------------------------------------------------------------
def init_ccgen_params(key, d_noise_num_of_input, layer, gan_hidden_dim,
                      num_of_output):
    """Returns a list of (W, b, relu_flag) with W stored as (in, out)."""
    params = []
    d_in = d_noise_num_of_input
    dims = []
    if layer == 1:
        dims.append((d_in, num_of_output, False))
    else:
        for _ in range(layer - 1):
            dims.append((d_in, gan_hidden_dim, True))
            d_in = gan_hidden_dim
        dims.append((d_in, num_of_output, False))

    for (fan_in, fan_out, relu) in dims:
        key, kw, kb = jax.random.split(key, 3)
        bound = 1.0 / jnp.sqrt(jnp.float32(fan_in))
        w = jax.random.uniform(kw, (fan_in, fan_out), jnp.float32,
                               minval=-bound, maxval=bound)
        b = jax.random.uniform(kb, (1, fan_out), jnp.float32,
                               minval=-bound, maxval=bound)
        params.append((w, b, relu))
    return params


def prepare_ccgen_params(params, d_noise, weight_dtype=jnp.float32):
    """One-time prep.

    - Split W1 at d_noise (kills the runtime concat).
    - Zero-pad every hidden layer width (W cols, bias, and next W rows) to a
      multiple of 128: lane-dense intermediates, numerically exact.
    - Build two final-layer variants: padded-to-128 output columns (small-B,
      unmasked lane-dense store) and tight output columns (large-B, minimal
      HBM write bytes).
    - Optionally store weights in bf16 (biases stay f32).
    """
    num_layers = len(params)
    relu_flags = tuple(bool(r) for (_, _, r) in params)
    num_of_output = params[-1][0].shape[1]
    out_pad = _round_up(num_of_output, 128)

    padded = []
    prev_cols = None
    for li, (w, b, _) in enumerate(params):
        fan_in, fan_out = w.shape
        if li > 0 and prev_cols is not None and prev_cols > fan_in:
            w = jnp.pad(w, ((0, prev_cols - fan_in), (0, 0)))
        if li < num_layers - 1:
            cols = _round_up(fan_out, 128)
            if cols > fan_out:
                w = jnp.pad(w, ((0, 0), (0, cols - fan_out)))
                b = jnp.pad(b, ((0, 0), (0, cols - fan_out)))
            prev_cols = cols
        padded.append((w, b))

    last_w, last_b = padded[-1]
    pad = out_pad - num_of_output
    last_w_pad = jnp.pad(last_w, ((0, 0), (0, pad))) if pad else last_w
    last_b_pad = jnp.pad(last_b, ((0, 0), (0, pad))) if pad else last_b

    def _flatten(lw, lb):
        if num_layers == 1:
            flat = [lw[:d_noise, :], lw[d_noise:, :], lb]
        else:
            w1, b1 = padded[0]
            flat = [w1[:d_noise, :], w1[d_noise:, :], b1]
            for li in range(1, num_layers - 1):
                w, b = padded[li]
                flat += [w, b]
            flat += [lw, lb]
        out = []
        for i, a in enumerate(flat):
            is_bias = (i >= 2 and i % 2 == 0)
            dt = jnp.float32 if is_bias else weight_dtype
            out.append(jnp.asarray(a, dt))
        return out

    return {
        "flat_padded": _flatten(last_w_pad, last_b_pad),  # small-B path
        "flat_tight": _flatten(last_w, last_b),           # large-B path
        "relu_flags": relu_flags,
        "d_noise": d_noise,
        "num_of_output": num_of_output,
        "out_pad": out_pad,
    }


# ---------------------------------------------------------------------------
# ccgen forward: one fused pallas_call
# ---------------------------------------------------------------------------
def ccgen_forward(prepared, noise, x, *, large_batch_tile=1024,
                  small_batch_threshold=256):
    relu_flags = prepared["relu_flags"]
    num_out = prepared["num_of_output"]
    out_pad = prepared["out_pad"]

    B, d_noise = noise.shape
    d_x = x.shape[1]
    dtype = noise.dtype

    small = B <= small_batch_threshold
    if small:
        # Latency path: single VMEM tile, lane-dense (128-padded) output so
        # the store is an unmasked vst; padding bytes are negligible here.
        TB = _round_up(max(B, 8), 8)
        Bp = TB
        flat = prepared["flat_padded"]
        out_cols = out_pad
    else:
        # Memory-bound path: big batch tiles (multiple of 8, up to 1024 rows)
        # so per-grid-step overhead (~0.35us) amortizes and DMAs approach HBM
        # bandwidth; at least 2 grid steps so "parallel" shards across v7x's
        # two TensorCores. Output columns kept tight (no 16->128 padding) so
        # the dominant HBM write traffic is not inflated 8x.
        TB = min(large_batch_tile, _round_up((B + 1) // 2, 8))
        Bp = _round_up(B, TB)
        flat = prepared["flat_tight"]
        out_cols = num_out

    if Bp != B:
        noise = jnp.pad(noise, ((0, Bp - B), (0, 0)))
        x = jnp.pad(x, ((0, Bp - B), (0, 0)))
    grid = (Bp // TB,)

    # Activations stream over batch tiles; params are grid-invariant so they
    # stay VMEM-resident across the whole batch grid.
    act_specs = [
        pl.BlockSpec((TB, d_noise), lambda i: (i, 0)),
        pl.BlockSpec((TB, d_x), lambda i: (i, 0)),
    ]
    param_specs = [pl.BlockSpec(a.shape, lambda i: (0, 0)) for a in flat]
    out_spec = pl.BlockSpec((TB, out_cols), lambda i: (i, 0))

    # Explicit scoped-VMEM budget: double-buffered activation/output tiles +
    # resident weights + intermediate headroom; clamped below v7x's 64 MiB
    # physical VMEM (and never lowered below the common 32 MiB default).
    max_width = max(a.shape[-1] for a in flat)
    tile_bytes = TB * (d_noise + d_x + out_cols) * 4
    weight_bytes = int(sum(a.size * a.dtype.itemsize for a in flat))
    act_bytes = 2 * TB * max_width * 4
    vmem_need = 2 * tile_bytes + weight_bytes + act_bytes + (4 << 20)
    vmem_limit = int(min(max(vmem_need, 32 << 20), 48 << 20))

    # Advisory cost estimate (matmul flops + one pass over all operands).
    flops = 0
    for i, a in enumerate(flat):
        if not (i >= 2 and i % 2 == 0):      # weights only (skip biases)
            flops += 2 * Bp * a.shape[0] * a.shape[1]
    bytes_accessed = int((noise.size + x.size) * noise.dtype.itemsize
                         + weight_bytes + Bp * out_cols * dtype.itemsize)

    out = pl.pallas_call(
        functools.partial(_ccgen_fused_kernel, relu_flags=relu_flags),
        out_shape=jax.ShapeDtypeStruct((Bp, out_cols), dtype),
        grid_spec=pltpu.PrefetchScalarGridSpec(
            num_scalar_prefetch=0,
            grid=grid,
            in_specs=act_specs + param_specs,
            out_specs=out_spec,
        ),
        compiler_params=pltpu.CompilerParams(
            dimension_semantics=("parallel",),
            vmem_limit_bytes=vmem_limit),
        cost_estimate=pl.CostEstimate(
            flops=int(flops), transcendentals=0,
            bytes_accessed=bytes_accessed),
    )(noise, x, *flat)

    if Bp != B or out_cols != num_out:
        out = out[:B, :num_out]
    return out


# ---------------------------------------------------------------------------
# Pure-JAX reference for a correctness sanity check
# ---------------------------------------------------------------------------
def ccgen_reference(params, noise, x):
    r = jnp.concatenate([noise, x], axis=1)
    for (w, b, relu) in params:
        r = r @ w + b
        if relu:
            r = jnp.maximum(r, 0.0)
    return r


if __name__ == "__main__":
    # Small, module-consistent shapes.
    batch = 8
    d_noise = 8          # noise feature dim
    d_x = 24             # conditioning feature dim
    d_noise_num_of_input = d_noise + d_x   # input dim after concat
    layer = 3
    gan_hidden_dim = 32
    num_of_output = 16

    key = jax.random.PRNGKey(0)
    k_params, k_noise, k_x, k_noise2, k_x2 = jax.random.split(key, 5)

    params = init_ccgen_params(k_params, d_noise_num_of_input, layer,
                               gan_hidden_dim, num_of_output)
    prepared = prepare_ccgen_params(params, d_noise)

    # --- small-batch / latency path (single tile, lane-dense padded output)
    noise = jax.random.normal(k_noise, (batch, d_noise), jnp.float32)
    x = jax.random.normal(k_x, (batch, d_x), jnp.float32)
    out = jax.block_until_ready(ccgen_forward(prepared, noise, x))
    ref = ccgen_reference(params, noise, x)
    assert out.shape == (batch, num_of_output)
    assert jnp.allclose(out, ref, atol=1e-4, rtol=1e-4), "small-B mismatch"

    # --- large-batch / memory-bound path (>=2 grid steps, tight output cols)
    big = 600
    noise2 = jax.random.normal(k_noise2, (big, d_noise), jnp.float32)
    x2 = jax.random.normal(k_x2, (big, d_x), jnp.float32)
    out2 = jax.block_until_ready(ccgen_forward(prepared, noise2, x2))
    ref2 = ccgen_reference(params, noise2, x2)
    assert out2.shape == (big, num_of_output)
    assert jnp.allclose(out2, ref2, atol=1e-4, rtol=1e-4), "large-B mismatch"

    print("KERNEL_OK")
</pallas_src>

<mosaic_0001>
module attributes {stable_mosaic.version = 11 : i64} {
  func.func @_ccgen_fused_kernel(%arg0: i32, %arg1: memref<8x8xf32, #tpu.memory_space<vmem>>, %arg2: memref<8x24xf32, #tpu.memory_space<vmem>>, %arg3: memref<8x128xf32, #tpu.memory_space<vmem>>, %arg4: memref<24x128xf32, #tpu.memory_space<vmem>>, %arg5: memref<1x128xf32, #tpu.memory_space<vmem>>, %arg6: memref<128x128xf32, #tpu.memory_space<vmem>>, %arg7: memref<1x128xf32, #tpu.memory_space<vmem>>, %arg8: memref<128x128xf32, #tpu.memory_space<vmem>>, %arg9: memref<1x128xf32, #tpu.memory_space<vmem>>, %arg10: memref<8x128xf32, #tpu.memory_space<vmem>>) attributes {dimension_semantics = [#tpu.dimension_semantics<parallel>], iteration_bounds = array<i64: 1>, scalar_prefetch = 0 : i64, scratch_operands = 0 : i64, tpu.core_type = #tpu.core_type<tc>, window_params = [{transform_indices = @transform_0, window_bounds = array<i64: 8, 8>}, {transform_indices = @transform_1, window_bounds = array<i64: 8, 24>}, {pipeline_mode = #tpu.pipeline_mode<synchronous>, transform_indices = @transform_2, window_bounds = array<i64: 8, 128>}, {pipeline_mode = #tpu.pipeline_mode<synchronous>, transform_indices = @transform_3, window_bounds = array<i64: 24, 128>}, {pipeline_mode = #tpu.pipeline_mode<synchronous>, transform_indices = @transform_4, window_bounds = array<i64: 1, 128>}, {pipeline_mode = #tpu.pipeline_mode<synchronous>, transform_indices = @transform_5, window_bounds = array<i64: 128, 128>}, {pipeline_mode = #tpu.pipeline_mode<synchronous>, transform_indices = @transform_6, window_bounds = array<i64: 1, 128>}, {pipeline_mode = #tpu.pipeline_mode<synchronous>, transform_indices = @transform_7, window_bounds = array<i64: 128, 128>}, {pipeline_mode = #tpu.pipeline_mode<synchronous>, transform_indices = @transform_8, window_bounds = array<i64: 1, 128>}, {transform_indices = @transform_9, window_bounds = array<i64: 8, 128>}]} {
    %c0 = arith.constant 0 : index
    %c0_0 = arith.constant 0 : index
    %0 = vector.load %arg3[%c0, %c0_0] : memref<8x128xf32, #tpu.memory_space<vmem>>, vector<8x128xf32>
    %c0_1 = arith.constant 0 : index
    %c0_2 = arith.constant 0 : index
    %1 = vector.load %arg4[%c0_1, %c0_2] : memref<24x128xf32, #tpu.memory_space<vmem>>, vector<24x128xf32>
    %c0_3 = arith.constant 0 : index
    %c0_4 = arith.constant 0 : index
    %2 = vector.load %arg1[%c0_3, %c0_4] : memref<8x8xf32, #tpu.memory_space<vmem>>, vector<8x8xf32>
    %c0_5 = arith.constant 0 : index
    %c0_6 = arith.constant 0 : index
    %3 = vector.load %arg2[%c0_5, %c0_6] : memref<8x24xf32, #tpu.memory_space<vmem>>, vector<8x24xf32>
    %cst = arith.constant dense<0.000000e+00> : vector<8x128xf32>
    %4 = tpu.matmul %2, %0, %cst {dimension_numbers = #tpu.dot_dimension_numbers<[1], [0], [0], [1], [0, 0, 1, 1], [], []>} : vector<8x8xf32>, vector<8x128xf32>, vector<8x128xf32> -> vector<8x128xf32>
    %cst_7 = arith.constant dense<0.000000e+00> : vector<8x128xf32>
    %5 = tpu.matmul %3, %1, %cst_7 {dimension_numbers = #tpu.dot_dimension_numbers<[1], [0], [0], [1], [0, 0, 1, 1], [], []>} : vector<8x24xf32>, vector<24x128xf32>, vector<8x128xf32> -> vector<8x128xf32>
    %6 = arith.addf %4, %5 : vector<8x128xf32>
    %c0_8 = arith.constant 0 : index
    %c0_9 = arith.constant 0 : index
    %7 = vector.load %arg5[%c0_8, %c0_9] : memref<1x128xf32, #tpu.memory_space<vmem>>, vector<1x128xf32>
    %8 = vector.broadcast %7 : vector<1x128xf32> to vector<8x128xf32>
    %9 = arith.addf %6, %8 : vector<8x128xf32>
    %cst_10 = arith.constant 0.000000e+00 : f32
    %10 = vector.broadcast %cst_10 : f32 to vector<8x128xf32>
    %11 = arith.maximumf %9, %10 : vector<8x128xf32>
    %c0_11 = arith.constant 0 : index
    %c0_12 = arith.constant 0 : index
    %12 = vector.load %arg6[%c0_11, %c0_12] : memref<128x128xf32, #tpu.memory_space<vmem>>, vector<128x128xf32>
    %c0_13 = arith.constant 0 : index
    %c0_14 = arith.constant 0 : index
    %13 = vector.load %arg7[%c0_13, %c0_14] : memref<1x128xf32, #tpu.memory_space<vmem>>, vector<1x128xf32>
    %cst_15 = arith.constant dense<0.000000e+00> : vector<8x128xf32>
    %14 = tpu.matmul %11, %12, %cst_15 {dimension_numbers = #tpu.dot_dimension_numbers<[1], [0], [0], [1], [0, 0, 1, 1], [], []>} : vector<8x128xf32>, vector<128x128xf32>, vector<8x128xf32> -> vector<8x128xf32>
    %15 = vector.broadcast %13 : vector<1x128xf32> to vector<8x128xf32>
    %16 = arith.addf %14, %15 : vector<8x128xf32>
    %cst_16 = arith.constant 0.000000e+00 : f32
    %17 = vector.broadcast %cst_16 : f32 to vector<8x128xf32>
    %18 = arith.maximumf %16, %17 : vector<8x128xf32>
    %c0_17 = arith.constant 0 : index
    %c0_18 = arith.constant 0 : index
    %19 = vector.load %arg8[%c0_17, %c0_18] : memref<128x128xf32, #tpu.memory_space<vmem>>, vector<128x128xf32>
    %c0_19 = arith.constant 0 : index
    %c0_20 = arith.constant 0 : index
    %20 = vector.load %arg9[%c0_19, %c0_20] : memref<1x128xf32, #tpu.memory_space<vmem>>, vector<1x128xf32>
    %cst_21 = arith.constant dense<0.000000e+00> : vector<8x128xf32>
    %21 = tpu.matmul %18, %19, %cst_21 {dimension_numbers = #tpu.dot_dimension_numbers<[1], [0], [0], [1], [0, 0, 1, 1], [], []>} : vector<8x128xf32>, vector<128x128xf32>, vector<8x128xf32> -> vector<8x128xf32>
    %22 = vector.broadcast %20 : vector<1x128xf32> to vector<8x128xf32>
    %23 = arith.addf %21, %22 : vector<8x128xf32>
    %c0_22 = arith.constant 0 : index
    %c0_23 = arith.constant 0 : index
    %24 = vector.load %arg10[%c0_22, %c0_23] : memref<8x128xf32, #tpu.memory_space<vmem>>, vector<8x128xf32>
    tpu.vector_store %arg10[%c0_22, %c0_23], %23 {strides = array<i32>} : memref<8x128xf32, #tpu.memory_space<vmem>>, vector<8x128xf32>,
    return
  }
  func.func @transform_0(%arg0: i32) -> (i32, i32) {
    %c0_i32 = arith.constant 0 : i32
    %c0_i32_0 = arith.constant 0 : i32
    return %arg0, %c0_i32 : i32, i32
  }
  func.func @transform_1(%arg0: i32) -> (i32, i32) {
    %c0_i32 = arith.constant 0 : i32
    %c0_i32_0 = arith.constant 0 : i32
    return %arg0, %c0_i32 : i32, i32
  }
  func.func @transform_2(%arg0: i32) -> (i32, i32) {
    %c0_i32 = arith.constant 0 : i32
    %c0_i32_0 = arith.constant 0 : i32
    %c0_i32_1 = arith.constant 0 : i32
    return %c0_i32, %c0_i32_0 : i32, i32
  }
  func.func @transform_3(%arg0: i32) -> (i32, i32) {
    %c0_i32 = arith.constant 0 : i32
    %c0_i32_0 = arith.constant 0 : i32
    %c0_i32_1 = arith.constant 0 : i32
    return %c0_i32, %c0_i32_0 : i32, i32
  }
  func.func @transform_4(%arg0: i32) -> (i32, i32) {
    %c0_i32 = arith.constant 0 : i32
    %c0_i32_0 = arith.constant 0 : i32
    %c0_i32_1 = arith.constant 0 : i32
    return %c0_i32, %c0_i32_0 : i32, i32
  }
  func.func @transform_5(%arg0: i32) -> (i32, i32) {
    %c0_i32 = arith.constant 0 : i32
    %c0_i32_0 = arith.constant 0 : i32
    %c0_i32_1 = arith.constant 0 : i32
    return %c0_i32, %c0_i32_0 : i32, i32
  }
  func.func @transform_6(%arg0: i32) -> (i32, i32) {
    %c0_i32 = arith.constant 0 : i32
    %c0_i32_0 = arith.constant 0 : i32
    %c0_i32_1 = arith.constant 0 : i32
    return %c0_i32, %c0_i32_0 : i32, i32
  }
  func.func @transform_7(%arg0: i32) -> (i32, i32) {
    %c0_i32 = arith.constant 0 : i32
    %c0_i32_0 = arith.constant 0 : i32
    %c0_i32_1 = arith.constant 0 : i32
    return %c0_i32, %c0_i32_0 : i32, i32
  }
  func.func @transform_8(%arg0: i32) -> (i32, i32) {
    %c0_i32 = arith.constant 0 : i32
    %c0_i32_0 = arith.constant 0 : i32
    %c0_i32_1 = arith.constant 0 : i32
    return %c0_i32, %c0_i32_0 : i32, i32
  }
  func.func @transform_9(%arg0: i32) -> (i32, i32) {
    %c0_i32 = arith.constant 0 : i32
    %c0_i32_0 = arith.constant 0 : i32
    return %arg0, %c0_i32 : i32, i32
  }
}

</mosaic_0001>

<llo_original>
// kernel: tpu_custom_call.1
$region0: #{tpu_custom_call.1}
  #allocation0 [shape = 'u32[]', space=smem, size = 0x4, offset = 0x4, fixed_abs, tag = 'smem constant byte address 0x4 - core index']
  #allocation1 [shape = 'u32[144,128]{1,0:T(1,128)}', space=vmem, size = 0x12000, scoped, tag = 'internal scratch']
  %s0 = inlined_call_operand.hbm [shape: f32[8,8], index: 0, kind: input, shape index: {}]
  %s1 = inlined_call_operand.hbm [shape: f32[8,24], index: 1, kind: input, shape index: {}]
  %s2 = inlined_call_operand.hbm [shape: f32[8,128], index: 2, kind: input, shape index: {}]
  %s3 = inlined_call_operand.hbm [shape: f32[24,128], index: 3, kind: input, shape index: {}]
  %s4 = inlined_call_operand.vmem [shape: f32[1,128], index: 4, kind: input, shape index: {}]
  %s5 = inlined_call_operand.hbm [shape: f32[128,128], index: 5, kind: input, shape index: {}]
  %s6 = inlined_call_operand.vmem [shape: f32[1,128], index: 6, kind: input, shape index: {}]
  %s7 = inlined_call_operand.hbm [shape: f32[128,128], index: 7, kind: input, shape index: {}]
  %s8 = inlined_call_operand.vmem [shape: f32[1,128], index: 8, kind: input, shape index: {}]
  %s9 = inlined_call_operand.hbm [shape: f32[8,128], index: 9, kind: output, shape index: {}]
  %s10 = sld [smem:[#allocation0]]
  $region70: #{tpu_custom_call.1} parent=0
    _
  %s12 = ssub.s32 1, %s10
  %s13 = scalar_select 0, %s12, %s10
  $region1: #{tpu_custom_call.1} parent=0
    #allocation2 [shape = 'u8[4096]{0}', space=vmem, size = 0x1000, scoped, tag = 'input window, operand 0, single buffered']
    #allocation3 [shape = 's32[1]{0}', space=sflag, size = 0x4, scoped, tag = 'scoped memory for tpu_custom_call.1']
    #allocation4 [shape = 's32[1]{0}', space=sflag, size = 0x4, scoped, tag = 'scoped memory for tpu_custom_call.1']
    #allocation5 [shape = 'u8[4096]{0}', space=vmem, size = 0x1000, scoped, tag = 'input window, operand 1, single buffered']
    #allocation6 [shape = 's32[1]{0}', space=sflag, size = 0x4, scoped, tag = 'scoped memory for tpu_custom_call.1']
    #allocation7 [shape = 'u8[4096]{0}', space=vmem, size = 0x1000, scoped, tag = 'input window, operand 2, single buffered']
    #allocation8 [shape = 'u8[12288]{0}', space=vmem, size = 0x3000, scoped, tag = 'input window, operand 3, single buffered']
    #allocation9 [shape = 's32[1]{0}', space=sflag, size = 0x4, scoped, tag = 'scoped memory for tpu_custom_call.1']
    #allocation10 [shape = 'u8[65536]{0}', space=vmem, size = 0x10000, scoped, tag = 'input window, operand 5, single buffered']
    #allocation11 [shape = 'u8[65536]{0}', space=vmem, size = 0x10000, scoped, tag = 'input window, operand 7, single buffered']
    #allocation12 [shape = 's32[1]{0}', space=sflag, size = 0x4, scoped, tag = 'scoped memory for tpu_custom_call.1']
    #allocation13 [shape = 'u8[4096]{0}', space=vmem, size = 0x1000, scoped, tag = 'output window, operand 0, single buffered']
    %14 = vsyncpa [#allocation3], 0
    %15 = vsyncpa [#allocation6], 0
    %16 = vsyncpa [#allocation9], 0
    %17 = vsyncpa [#allocation12], 0
    %18 = vsyncpa [#allocation4], 0
    // Predicated region
    $region2: #{tpu_custom_call.1} parent=1 // pred_check
      _
    $region3: #{tpu_custom_call.1} parent=1 // pred_check_branch
      %20 = sbr.rel (0) target = $region5
    $region4: #{tpu_custom_call.1} parent=1 // pred_region
      %s22 = ssub.s32 128, 128
      %23 = vsyncadd [#allocation3], %s22
      %s25 = sshll.u32 [#allocation2], 4
      %s26 = int_to_ptr.vmem [resolvable:$true] %s25
      %28 = dma.hbm_to_vmem [thread:$0]  %s0, 128, %s26, [#allocation3]
    $region5: #{tpu_custom_call.1} parent=1 // pred_fallthru
      _
    // Predicated region
    $region6: #{tpu_custom_call.1} parent=1 // pred_check
      _
    $region7: #{tpu_custom_call.1} parent=1 // pred_check_branch
      %30 = sbr.rel (0) target = $region9
    $region8: #{tpu_custom_call.1} parent=1 // pred_region
      %s32 = ssub.s32 128, 128
      %33 = vsyncadd [#allocation6], %s32
      %s35 = sshll.u32 [#allocation5], 4
      %s36 = int_to_ptr.vmem [resolvable:$true] %s35
      %38 = dma.hbm_to_vmem [thread:$0]  %s1, 128, %s36, [#allocation6]
    $region9: #{tpu_custom_call.1} parent=1 // pred_fallthru
      _
    // Predicated region
    $region10: #{tpu_custom_call.1} parent=1 // pred_check
      _
    $region11: #{tpu_custom_call.1} parent=1 // pred_check_branch
      %40 = sbr.rel (0) target = $region13
    $region12: #{tpu_custom_call.1} parent=1 // pred_region
      %s42 = ssub.s32 128, 128
      %43 = vsyncadd [#allocation6], %s42
      %s45 = sshll.u32 [#allocation7], 4
      %s46 = int_to_ptr.vmem [resolvable:$true] %s45
      %48 = dma.hbm_to_vmem [thread:$0]  %s2, 128, %s46, [#allocation6]
    $region13: #{tpu_custom_call.1} parent=1 // pred_fallthru
      _
    // Predicated region
    $region14: #{tpu_custom_call.1} parent=1 // pred_check
      _
    $region15: #{tpu_custom_call.1} parent=1 // pred_check_branch
      %50 = sbr.rel (0) target = $region17
    $region16: #{tpu_custom_call.1} parent=1 // pred_region
      %s52 = ssub.s32 384, 384
      %53 = vsyncadd [#allocation9], %s52
      %s54 = sshll.u32 [#allocation8], 4
      %s55 = int_to_ptr.vmem [resolvable:$true] %s54
      %60 = dma.hbm_to_vmem [thread:$0]  %s3, 384, %s55, [#allocation9], 128, 128, 8
    $region17: #{tpu_custom_call.1} parent=1 // pred_fallthru
      _
    // Predicated region
    $region18: #{tpu_custom_call.1} parent=1 // pred_check
      _
    $region19: #{tpu_custom_call.1} parent=1 // pred_check_branch
      %62 = sbr.rel (0) target = $region21
    $region20: #{tpu_custom_call.1} parent=1 // pred_region
      _
    $region21: #{tpu_custom_call.1} parent=1 // pred_fallthru
      _
    // Predicated region
    $region22: #{tpu_custom_call.1} parent=1 // pred_check
      _
    $region23: #{tpu_custom_call.1} parent=1 // pred_check_branch
      %64 = sbr.rel (0) target = $region25
    $region24: #{tpu_custom_call.1} parent=1 // pred_region
      %s66 = ssub.s32 2048, 2048
      %67 = vsyncadd [#allocation9], %s66
      %s68 = sshll.u32 [#allocation10], 4
      %s69 = int_to_ptr.vmem [resolvable:$true] %s68
      %74 = dma.hbm_to_vmem [thread:$0]  %s5, 2048, %s69, [#allocation9], 128, 128, 8
    $region25: #{tpu_custom_call.1} parent=1 // pred_fallthru
      _
    // Predicated region
    $region26: #{tpu_custom_call.1} parent=1 // pred_check
      _
    $region27: #{tpu_custom_call.1} parent=1 // pred_check_branch
      %76 = sbr.rel (0) target = $region29
    $region28: #{tpu_custom_call.1} parent=1 // pred_region
      _
    $region29: #{tpu_custom_call.1} parent=1 // pred_fallthru
      _
    // Predicated region
    $region30: #{tpu_custom_call.1} parent=1 // pred_check
      _
    $region31: #{tpu_custom_call.1} parent=1 // pred_check_branch
      %78 = sbr.rel (0) target = $region33
    $region32: #{tpu_custom_call.1} parent=1 // pred_region
      %s80 = ssub.s32 2048, 2048
      %81 = vsyncadd [#allocation12], %s80
      %s82 = sshll.u32 [#allocation11], 4
      %s83 = int_to_ptr.vmem [resolvable:$true] %s82
      %88 = dma.hbm_to_vmem [thread:$0]  %s7, 2048, %s83, [#allocation12], 128, 128, 8
    $region33: #{tpu_custom_call.1} parent=1 // pred_fallthru
      _
    // Predicated region
    $region34: #{tpu_custom_call.1} parent=1 // pred_check
      _
    $region35: #{tpu_custom_call.1} parent=1 // pred_check_branch
      %90 = sbr.rel (0) target = $region37
    $region36: #{tpu_custom_call.1} parent=1 // pred_region
      _
    $region37: #{tpu_custom_call.1} parent=1 // pred_fallthru
      _
    // Predicated region
    $region38: #{tpu_custom_call.1} parent=1 // pred_check
      _
    $region39: #{tpu_custom_call.1} parent=1 // pred_check_branch
      %92 = sbr.rel (0) target = $region41
    $region40: #{tpu_custom_call.1} parent=1 // pred_region
      %93 = dma.done [#allocation3], 128
    $region41: #{tpu_custom_call.1} parent=1 // pred_fallthru
      _
    // Predicated region
    $region42: #{tpu_custom_call.1} parent=1 // pred_check
      _
    $region43: #{tpu_custom_call.1} parent=1 // pred_check_branch
      %95 = sbr.rel (0) target = $region45
    $region44: #{tpu_custom_call.1} parent=1 // pred_region
      %96 = dma.done [#allocation6], 128
    $region45: #{tpu_custom_call.1} parent=1 // pred_fallthru
      _
    // Predicated region
    $region46: #{tpu_custom_call.1} parent=1 // pred_check
      _
    $region47: #{tpu_custom_call.1} parent=1 // pred_check_branch
      %98 = sbr.rel (0) target = $region49
    $region48: #{tpu_custom_call.1} parent=1 // pred_region
      %99 = dma.done [#allocation6], 128
    $region49: #{tpu_custom_call.1} parent=1 // pred_fallthru
      _
    // Predicated region
    $region50: #{tpu_custom_call.1} parent=1 // pred_check
      _
    $region51: #{tpu_custom_call.1} parent=1 // pred_check_branch
      %101 = sbr.rel (0) target = $region53
    $region52: #{tpu_custom_call.1} parent=1 // pred_region
      %102 = dma.done [#allocation9], 384
    $region53: #{tpu_custom_call.1} parent=1 // pred_fallthru
      _
    // Predicated region
    $region54: #{tpu_custom_call.1} parent=1 // pred_check
      _
    $region55: #{tpu_custom_call.1} parent=1 // pred_check_branch
      %104 = sbr.rel (0) target = $region57
    $region56: #{tpu_custom_call.1} parent=1 // pred_region
      %105 = dma.done [#allocation9], 2048
    $region57: #{tpu_custom_call.1} parent=1 // pred_fallthru
      _
    // Predicated region
    $region58: #{tpu_custom_call.1} parent=1 // pred_check
      _
    $region59: #{tpu_custom_call.1} parent=1 // pred_check_branch
      %107 = sbr.rel (0) target = $region61
    $region60: #{tpu_custom_call.1} parent=1 // pred_region
      %108 = dma.done [#allocation12], 2048
    $region61: #{tpu_custom_call.1} parent=1 // pred_fallthru
      _
    %v109 = vld [vmem:[#allocation7] sm:$0xff]
    %v110 = vld [vmem:[#allocation8] sm:$0xff]
    %v111 = vld [vmem:[#allocation8 + $0x8] sm:$0xff]
    %v112 = vld [vmem:[#allocation8 + $0x10] sm:$0xff]
    %v113 = vld [vmem:[#allocation2] sm:$0xff]
    %v114 = vld [vmem:[#allocation5] sm:$0xff]
    %vm115 = vcmask 195584
    %v117 = vsel %vm115, %v114, 0
    %119 = vmatprep.subr.mxu0 0.0
    %120 = vmatpush1.msra.mxu0 0.0
    %121 = vmatprep.subr.mxu0 0.0
    %122 = vmatpush1.msra.mxu0 0.0
    %123 = vmatprep.subr.mxu0 0.0
    %124 = vmatpush1.msra.mxu0 0.0
    %125 = vmatprep.subr.mxu0 0.0
    %126 = vmatpush1.msra.mxu0 0.0
    %127 = vmatprep.subr.mxu0 0.0
    %128 = vmatpush1.msra.mxu0 0.0
    %129 = vmatprep.subr.mxu0 0.0
    %130 = vmatpush1.msra.mxu0 0.0
    %131 = vmatprep.subr.mxu0 0.0
    %132 = vmatpush1.msra.mxu0 0.0
    %133 = vmatprep.subr.mxu0 0.0
    %134 = vmatpush1.msra.mxu0 0.0
    %135 = vmatprep.subr.mxu0 0.0
    %136 = vmatpush1.msra.mxu0 0.0
    %137 = vmatprep.subr.mxu0 0.0
    %138 = vmatpush1.msra.mxu0 0.0
    %139 = vmatprep.subr.mxu0 0.0
    %140 = vmatpush1.msra.mxu0 0.0
    %141 = vmatprep.subr.mxu0 0.0
    %142 = vmatpush1.msra.mxu0 0.0
    %143 = vmatprep.subr.mxu0 0.0
    %144 = vmatpush1.msra.mxu0 0.0
    %145 = vmatprep.subr.mxu0 0.0
    %146 = vmatpush1.msra.mxu0 %v112
    %147 = vmatprep.subr.mxu0 0.0
    %148 = vmatpush1.msra.mxu0 %v111
    %149 = vmatprep.subr.mxu0 0.0
    %150 = vmatpush1.msra.mxu0 %v110
    %151 = vmatprep.subr.mxu0 0.0
    %152 = vmatpush2.msra.mxu0 0.0
    %153 = vmatprep.subr.mxu0 0.0
    %154 = vmatpush2.msra.mxu0 0.0
    %155 = vmatprep.subr.mxu0 0.0
    %156 = vmatpush2.msra.mxu0 0.0
    %157 = vmatprep.subr.mxu0 0.0
    %158 = vmatpush2.msra.mxu0 0.0
    %159 = vmatprep.subr.mxu0 0.0
    %160 = vmatpush2.msra.mxu0 0.0
    %161 = vmatprep.subr.mxu0 0.0
    %162 = vmatpush2.msra.mxu0 0.0
    %163 = vmatprep.subr.mxu0 0.0
    %164 = vmatpush2.msra.mxu0 0.0
    %165 = vmatprep.subr.mxu0 0.0
    %166 = vmatpush2.msra.mxu0 0.0
    %167 = vmatprep.subr.mxu0 0.0
    %168 = vmatpush2.msra.mxu0 0.0
    %169 = vmatprep.subr.mxu0 0.0
    %170 = vmatpush2.msra.mxu0 0.0
    %171 = vmatprep.subr.mxu0 0.0
    %172 = vmatpush2.msra.mxu0 0.0
    %173 = vmatprep.subr.mxu0 0.0
    %174 = vmatpush2.msra.mxu0 0.0
    %175 = vmatprep.subr.mxu0 0.0
    %176 = vmatpush2.msra.mxu0 0.0
    %177 = vmatprep.subr.mxu0 0.0
    %178 = vmatpush2.msra.mxu0 0.0
    %179 = vmatprep.subr.mxu0 0.0
    %180 = vmatpush2.msra.mxu0 0.0
    %181 = vmatprep.subr.mxu0 0.0
    %182 = vmatpush2.msra.mxu0 0.0
    %183 = vmatprep.mubr.f32.mxu0 0.0
    %184 = vmatmul.mubr.f32.gmra.mxu0 %v117
    %v185 = vpop.f32.mrf.mxu0
    %v186 = vadd.f32 0.0, %v185
    %v187 = vpop.f32.mrf.mxu0
    %188 = vdwg.mxu0
    %vm189 = vcmask 64512
    %v191 = vsel %vm189, %v113, 0
    %193 = vmatprep.subr.mxu0 0.0
    %194 = vmatpush1.msra.mxu0 0.0
    %195 = vmatprep.subr.mxu0 0.0
    %196 = vmatpush1.msra.mxu0 0.0
    %197 = vmatprep.subr.mxu0 0.0
    %198 = vmatpush1.msra.mxu0 0.0
    %199 = vmatprep.subr.mxu0 0.0
    %200 = vmatpush1.msra.mxu0 0.0
    %201 = vmatprep.subr.mxu0 0.0
    %202 = vmatpush1.msra.mxu0 0.0
    %203 = vmatprep.subr.mxu0 0.0
    %204 = vmatpush1.msra.mxu0 0.0
    %205 = vmatprep.subr.mxu0 0.0
    %206 = vmatpush1.msra.mxu0 0.0
    %207 = vmatprep.subr.mxu0 0.0
    %208 = vmatpush1.msra.mxu0 0.0
    %209 = vmatprep.subr.mxu0 0.0
    %210 = vmatpush1.msra.mxu0 0.0
    %211 = vmatprep.subr.mxu0 0.0
    %212 = vmatpush1.msra.mxu0 0.0
    %213 = vmatprep.subr.mxu0 0.0
    %214 = vmatpush1.msra.mxu0 0.0
    %215 = vmatprep.subr.mxu0 0.0
    %216 = vmatpush1.msra.mxu0 0.0
    %217 = vmatprep.subr.mxu0 0.0
    %218 = vmatpush1.msra.mxu0 0.0
    %219 = vmatprep.subr.mxu0 0.0
    %220 = vmatpush1.msra.mxu0 0.0
    %221 = vmatprep.subr.mxu0 0.0
    %222 = vmatpush1.msra.mxu0 0.0
    %223 = vmatprep.subr.mxu0 0.0
    %224 = vmatpush1.msra.mxu0 %v109
    %225 = vmatprep.subr.mxu0 0.0
    %226 = vmatpush2.msra.mxu0 0.0
    %227 = vmatprep.subr.mxu0 0.0
    %228 = vmatpush2.msra.mxu0 0.0
    %229 = vmatprep.subr.mxu0 0.0
    %230 = vmatpush2.msra.mxu0 0.0
    %231 = vmatprep.subr.mxu0 0.0
    %232 = vmatpush2.msra.mxu0 0.0
    %233 = vmatprep.subr.mxu0 0.0
    %234 = vmatpush2.msra.mxu0 0.0
    %235 = vmatprep.subr.mxu0 0.0
    %236 = vmatpush2.msra.mxu0 0.0
    %237 = vmatprep.subr.mxu0 0.0
    %238 = vmatpush2.msra.mxu0 0.0
    %239 = vmatprep.subr.mxu0 0.0
    %240 = vmatpush2.msra.mxu0 0.0
    %241 = vmatprep.subr.mxu0 0.0
    %242 = vmatpush2.msra.mxu0 0.0
    %243 = vmatprep.subr.mxu0 0.0
    %244 = vmatpush2.msra.mxu0 0.0
    %245 = vmatprep.subr.mxu0 0.0
    %246 = vmatpush2.msra.mxu0 0.0
    %247 = vmatprep.subr.mxu0 0.0
    %248 = vmatpush2.msra.mxu0 0.0
    %249 = vmatprep.subr.mxu0 0.0
    %250 = vmatpush2.msra.mxu0 0.0
    %251 = vmatprep.subr.mxu0 0.0
    %252 = vmatpush2.msra.mxu0 0.0
    %253 = vmatprep.subr.mxu0 0.0
    %254 = vmatpush2.msra.mxu0 0.0
    %255 = vmatprep.subr.mxu0 0.0
    %256 = vmatpush2.msra.mxu0 0.0
    %257 = vmatprep.mubr.f32.mxu0 0.0
    %258 = vmatmul.mubr.f32.gmra.mxu0 %v191
    %v259 = vpop.f32.mrf.mxu0
    %v260 = vadd.f32 %v186, %v259
    %v261 = vpop.f32.mrf.mxu0
    %262 = vdwg.mxu0
    %v263 = vld [vmem:[%s4] sm:$0x1]
    %v265 = vlaneseq
    %v266 = vshrl.u32 %v265, 7
    %v267 = vsub.s32 0, %v266
    %v268 = vrot.slane %v263, %v267
    %v270 = vadd.f32 %v260, %v268
    %v271 = vmax.f32 %v270, 0.0
    %v272 = vld [vmem:[#allocation10] sm:$0xff]
    %v273 = vld [vmem:[#allocation10 + $0x8] sm:$0xff]
    %v274 = vld [vmem:[#allocation10 + $0x10] sm:$0xff]
    %v275 = vld [vmem:[#allocation10 + $0x18] sm:$0xff]
    %v276 = vld [vmem:[#allocation10 + $0x20] sm:$0xff]
    %v277 = vld [vmem:[#allocation10 + $0x28] sm:$0xff]
    %v278 = vld [vmem:[#allocation10 + $0x30] sm:$0xff]
    %v279 = vld [vmem:[#allocation10 + $0x38] sm:$0xff]
    %v280 = vld [vmem:[#allocation10 + $0x40] sm:$0xff]
    %v281 = vld [vmem:[#allocation10 + $0x48] sm:$0xff]
    %v282 = vld [vmem:[#allocation10 + $0x50] sm:$0xff]
    %v283 = vld [vmem:[#allocation10 + $0x58] sm:$0xff]
    %v284 = vld [vmem:[#allocation10 + $0x60] sm:$0xff]
    %v285 = vld [vmem:[#allocation10 + $0x68] sm:$0xff]
    %v286 = vld [vmem:[#allocation10 + $0x70] sm:$0xff]
    %v287 = vld [vmem:[#allocation10 + $0x78] sm:$0xff]
    %v288 = vld [vmem:[%s6] sm:$0x1]
    %v290 = vlaneseq
    %v291 = vshrl.u32 %v290, 7
    %v292 = vsub.s32 0, %v291
    %v293 = vrot.slane %v288, %v292
    %295 = vmatprep.subr.mxu0 0.0
    %296 = vmatpush1.msra.mxu0 %v287
    %297 = vmatprep.subr.mxu0 0.0
    %298 = vmatpush1.msra.mxu0 %v286
    %299 = vmatprep.subr.mxu0 0.0
    %300 = vmatpush1.msra.mxu0 %v285
    %301 = vmatprep.subr.mxu0 0.0
    %302 = vmatpush1.msra.mxu0 %v284
    %303 = vmatprep.subr.mxu0 0.0
    %304 = vmatpush1.msra.mxu0 %v283
    %305 = vmatprep.subr.mxu0 0.0
    %306 = vmatpush1.msra.mxu0 %v282
    %307 = vmatprep.subr.mxu0 0.0
    %308 = vmatpush1.msra.mxu0 %v281
    %309 = vmatprep.subr.mxu0 0.0
    %310 = vmatpush1.msra.mxu0 %v280
    %311 = vmatprep.subr.mxu0 0.0
    %312 = vmatpush1.msra.mxu0 %v279
    %313 = vmatprep.subr.mxu0 0.0
    %314 = vmatpush1.msra.mxu0 %v278
    %315 = vmatprep.subr.mxu0 0.0
    %316 = vmatpush1.msra.mxu0 %v277
    %317 = vmatprep.subr.mxu0 0.0
    %318 = vmatpush1.msra.mxu0 %v276
    %319 = vmatprep.subr.mxu0 0.0
    %320 = vmatpush1.msra.mxu0 %v275
    %321 = vmatprep.subr.mxu0 0.0
    %322 = vmatpush1.msra.mxu0 %v274
    %323 = vmatprep.subr.mxu0 0.0
    %324 = vmatpush1.msra.mxu0 %v273
    %325 = vmatprep.subr.mxu0 0.0
    %326 = vmatpush1.msra.mxu0 %v272
    %327 = vmatprep.subr.mxu0 0.0
    %328 = vmatpush2.msra.mxu0 0.0
    %329 = vmatprep.subr.mxu0 0.0
    %330 = vmatpush2.msra.mxu0 0.0
    %331 = vmatprep.subr.mxu0 0.0
    %332 = vmatpush2.msra.mxu0 0.0
    %333 = vmatprep.subr.mxu0 0.0
    %334 = vmatpush2.msra.mxu0 0.0
    %335 = vmatprep.subr.mxu0 0.0
    %336 = vmatpush2.msra.mxu0 0.0
    %337 = vmatprep.subr.mxu0 0.0
    %338 = vmatpush2.msra.mxu0 0.0
    %339 = vmatprep.subr.mxu0 0.0
    %340 = vmatpush2.msra.mxu0 0.0
    %341 = vmatprep.subr.mxu0 0.0
    %342 = vmatpush2.msra.mxu0 0.0
    %343 = vmatprep.subr.mxu0 0.0
    %344 = vmatpush2.msra.mxu0 0.0
    %345 = vmatprep.subr.mxu0 0.0
    %346 = vmatpush2.msra.mxu0 0.0
    %347 = vmatprep.subr.mxu0 0.0
    %348 = vmatpush2.msra.mxu0 0.0
    %349 = vmatprep.subr.mxu0 0.0
    %350 = vmatpush2.msra.mxu0 0.0
    %351 = vmatprep.subr.mxu0 0.0
    %352 = vmatpush2.msra.mxu0 0.0
    %353 = vmatprep.subr.mxu0 0.0
    %354 = vmatpush2.msra.mxu0 0.0
    %355 = vmatprep.subr.mxu0 0.0
    %356 = vmatpush2.msra.mxu0 0.0
    %357 = vmatprep.subr.mxu0 0.0
    %358 = vmatpush2.msra.mxu0 0.0
    %359 = vmatprep.mubr.f32.mxu0 0.0
    %360 = vmatmul.mubr.f32.gmra.mxu0 %v271
    %v361 = vpop.f32.mrf.mxu0
    %v362 = vadd.f32 %v293, %v361
    %v363 = vpop.f32.mrf.mxu0
    %364 = vdwg.mxu0
    %v365 = vmax.f32 %v362, 0.0
    %v366 = vld [vmem:[#allocation11] sm:$0xff]
    %v367 = vld [vmem:[#allocation11 + $0x8] sm:$0xff]
    %v368 = vld [vmem:[#allocation11 + $0x10] sm:$0xff]
    %v369 = vld [vmem:[#allocation11 + $0x18] sm:$0xff]
    %v370 = vld [vmem:[#allocation11 + $0x20] sm:$0xff]
    %v371 = vld [vmem:[#allocation11 + $0x28] sm:$0xff]
    %v372 = vld [vmem:[#allocation11 + $0x30] sm:$0xff]
    %v373 = vld [vmem:[#allocation11 + $0x38] sm:$0xff]
    %v374 = vld [vmem:[#allocation11 + $0x40] sm:$0xff]
    %v375 = vld [vmem:[#allocation11 + $0x48] sm:$0xff]
    %v376 = vld [vmem:[#allocation11 + $0x50] sm:$0xff]
    %v377 = vld [vmem:[#allocation11 + $0x58] sm:$0xff]
    %v378 = vld [vmem:[#allocation11 + $0x60] sm:$0xff]
    %v379 = vld [vmem:[#allocation11 + $0x68] sm:$0xff]
    %v380 = vld [vmem:[#allocation11 + $0x70] sm:$0xff]
    %v381 = vld [vmem:[#allocation11 + $0x78] sm:$0xff]
    %v382 = vld [vmem:[%s8] sm:$0x1]
    %v384 = vlaneseq
    %v385 = vshrl.u32 %v384, 7
    %v386 = vsub.s32 0, %v385
    %v387 = vrot.slane %v382, %v386
    %389 = vmatprep.subr.mxu0 0.0
    %390 = vmatpush1.msra.mxu0 %v381
    %391 = vmatprep.subr.mxu0 0.0
    %392 = vmatpush1.msra.mxu0 %v380
    %393 = vmatprep.subr.mxu0 0.0
    %394 = vmatpush1.msra.mxu0 %v379
    %395 = vmatprep.subr.mxu0 0.0
    %396 = vmatpush1.msra.mxu0 %v378
    %397 = vmatprep.subr.mxu0 0.0
    %398 = vmatpush1.msra.mxu0 %v377
    %399 = vmatprep.subr.mxu0 0.0
    %400 = vmatpush1.msra.mxu0 %v376
    %401 = vmatprep.subr.mxu0 0.0
    %402 = vmatpush1.msra.mxu0 %v375
    %403 = vmatprep.subr.mxu0 0.0
    %404 = vmatpush1.msra.mxu0 %v374
    %405 = vmatprep.subr.mxu0 0.0
    %406 = vmatpush1.msra.mxu0 %v373
    %407 = vmatprep.subr.mxu0 0.0
    %408 = vmatpush1.msra.mxu0 %v372
    %409 = vmatprep.subr.mxu0 0.0
    %410 = vmatpush1.msra.mxu0 %v371
    %411 = vmatprep.subr.mxu0 0.0
    %412 = vmatpush1.msra.mxu0 %v370
    %413 = vmatprep.subr.mxu0 0.0
    %414 = vmatpush1.msra.mxu0 %v369
    %415 = vmatprep.subr.mxu0 0.0
    %416 = vmatpush1.msra.mxu0 %v368
    %417 = vmatprep.subr.mxu0 0.0
    %418 = vmatpush1.msra.mxu0 %v367
    %419 = vmatprep.subr.mxu0 0.0
    %420 = vmatpush1.msra.mxu0 %v366
    %421 = vmatprep.subr.mxu0 0.0
    %422 = vmatpush2.msra.mxu0 0.0
    %423 = vmatprep.subr.mxu0 0.0
    %424 = vmatpush2.msra.mxu0 0.0
    %425 = vmatprep.subr.mxu0 0.0
    %426 = vmatpush2.msra.mxu0 0.0
    %427 = vmatprep.subr.mxu0 0.0
    %428 = vmatpush2.msra.mxu0 0.0
    %429 = vmatprep.subr.mxu0 0.0
    %430 = vmatpush2.msra.mxu0 0.0
    %431 = vmatprep.subr.mxu0 0.0
    %432 = vmatpush2.msra.mxu0 0.0
    %433 = vmatprep.subr.mxu0 0.0
    %434 = vmatpush2.msra.mxu0 0.0
    %435 = vmatprep.subr.mxu0 0.0
    %436 = vmatpush2.msra.mxu0 0.0
    %437 = vmatprep.subr.mxu0 0.0
    %438 = vmatpush2.msra.mxu0 0.0
    %439 = vmatprep.subr.mxu0 0.0
    %440 = vmatpush2.msra.mxu0 0.0
    %441 = vmatprep.subr.mxu0 0.0
    %442 = vmatpush2.msra.mxu0 0.0
    %443 = vmatprep.subr.mxu0 0.0
    %444 = vmatpush2.msra.mxu0 0.0
    %445 = vmatprep.subr.mxu0 0.0
    %446 = vmatpush2.msra.mxu0 0.0
    %447 = vmatprep.subr.mxu0 0.0
    %448 = vmatpush2.msra.mxu0 0.0
    %449 = vmatprep.subr.mxu0 0.0
    %450 = vmatpush2.msra.mxu0 0.0
    %451 = vmatprep.subr.mxu0 0.0
    %452 = vmatpush2.msra.mxu0 0.0
    %453 = vmatprep.mubr.f32.mxu0 0.0
    %454 = vmatmul.mubr.f32.gmra.mxu0 %v365
    %v455 = vpop.f32.mrf.mxu0
    %v456 = vadd.f32 %v387, %v455
    %v457 = vpop.f32.mrf.mxu0
    %458 = vdwg.mxu0
    %459 = vst [vmem:[#allocation13] sm:$0xff] %v456
    // Predicated region
    $region62: #{tpu_custom_call.1} parent=1 // pred_check
      _
    $region63: #{tpu_custom_call.1} parent=1 // pred_check_branch
      %461 = sbr.rel (0) target = $region65
    $region64: #{tpu_custom_call.1} parent=1 // pred_region
      %s463 = ssub.s32 128, 128
      %464 = vsyncadd [#allocation4], %s463
      %s466 = sshll.u32 [#allocation13], 4
      %s467 = int_to_ptr.vmem [resolvable:$true] %s466
      %469 = dma.vmem_to_hbm [thread:$0]  %s467, 128, %s9, [#allocation4]
    $region65: #{tpu_custom_call.1} parent=1 // pred_fallthru
      _
    // Predicated region
    $region66: #{tpu_custom_call.1} parent=1 // pred_check
      _
    $region67: #{tpu_custom_call.1} parent=1 // pred_check_branch
      %471 = sbr.rel (0) target = $region69
    $region68: #{tpu_custom_call.1} parent=1 // pred_region
      %472 = dma.done [#allocation4], 128
    $region69: #{tpu_custom_call.1} parent=1 // pred_fallthru
      _
    %473 = vsyncpa [#allocation3], 1
    %474 = vsyncpa [#allocation6], 1
    %475 = vsyncpa [#allocation9], 1
    %476 = vsyncpa [#allocation12], 1
    %477 = vsyncpa [#allocation4], 1

</llo_original>
